<compile_context>
chip_gen: v7x
topology: tpu7x:2x2x1
jax: 0.10.0
libtpu: 0.0.40
codegen_flags: <defaults>
</compile_context>

<pallas_src>
import functools

import jax
import jax.numpy as jnp
from jax.experimental import pallas as pl
from jax.experimental.pallas import tpu as pltpu


def _attention_kernel(ht_ref, w_ref, out_ref, ct_ref,
                      q_sc, m_sc, l_sc, acc_sc, *, t_total, block_t):
    # ht_ref:  (BB, H)       current batch block (query, squeezed to 2-D)
    # w_ref:   (H, D)        shared weight (same block every grid step)
    # out_ref: (BB, Tt, D)   current (batch, T) tile of `outputs`
    # ct_ref:  (BB, D)       output block (lane-dense 2-D slab)
    # scratch: q_sc (BB, D), m_sc/l_sc (BB, 1), acc_sc (BB, D)  -- all f32
    kt = pl.program_id(1)

    @pl.when(kt == 0)
    def _init():
        # bmm1 once per batch block: a single (BB,H)x(H,D) MXU matmul.
        q_sc[...] = jnp.dot(ht_ref[...],
                            w_ref[...].astype(jnp.float32),
                            preferred_element_type=jnp.float32)
        m_sc[...] = jnp.full_like(m_sc, -jnp.inf)
        l_sc[...] = jnp.zeros_like(l_sc)
        acc_sc[...] = jnp.zeros_like(acc_sc)

    outs = out_ref[...].astype(jnp.float32)                  # (BB, Tt, D)
    q = q_sc[...]                                            # (BB, D)

    # scores: VPU multiply + lane reduce over D -> 2-D (BB, Tt).
    s = jnp.sum(q[:, None, :] * outs, axis=-1)               # (BB, Tt)

    # Mask padded T positions of a ragged final block (static no-op otherwise).
    if t_total % block_t != 0:
        pos = kt * block_t + jax.lax.broadcasted_iota(jnp.int32, s.shape, 1)
        s = jnp.where(pos < t_total, s, -jnp.inf)

    # Online (flash-style) softmax accumulation over the T grid axis.
    m_prev = m_sc[...]                                       # (BB, 1)
    m_new = jnp.maximum(m_prev, jnp.max(s, axis=-1, keepdims=True))
    corr = jnp.exp(m_prev - m_new)                           # (BB, 1)
    p = jnp.exp(s - m_new)                                   # (BB, Tt)
    l_sc[...] = corr * l_sc[...] + jnp.sum(p, axis=-1, keepdims=True)
    # ct partial: VPU multiply + sublane reduce over Tt (no tiny MXU matmuls).
    acc_sc[...] = corr * acc_sc[...] + jnp.sum(p[:, :, None] * outs, axis=1)
    m_sc[...] = m_new

    @pl.when(kt == pl.num_programs(1) - 1)
    def _finalize():
        # Exact divide (matches torch.softmax; EUP/VPU have plenty of slack).
        ct_ref[...] = (acc_sc[...] / l_sc[...]).astype(ct_ref.dtype)


def _choose_tiles(B, T, D, itemsize, vmem_budget_bytes=8 << 20):
    """Pick (block_b, block_t) respecting the (8,128)-tiling rule and a
    conservative VMEM budget for the double-buffered outputs tile (v7x has
    only 64 MiB VMEM / 32 MiB scoped default)."""
    # T tile: full T for short sequences, else a sublane-aligned chunk.
    block_t = T if T <= 512 else 512                       # 512 % 8 == 0

    # Batch tile: single step at tiny B; otherwise aim for >= 2 grid steps so
    # v7x's second TensorCore gets work via the "parallel" batch axis.
    if B <= 8:
        block_b = B
    else:
        block_b = min(max(pl.cdiv(B, 2), 8), 128)
        block_b = ((block_b + 7) // 8) * 8                  # sublane multiple
        block_b = min(block_b, ((B + 7) // 8) * 8)

    # Cap the double-buffered (block_b, block_t, D) outputs tile.
    def tile_bytes(bb, bt):
        return 2 * bb * bt * D * itemsize
    while block_b > 8 and tile_bytes(block_b, block_t) > vmem_budget_bytes:
        block_b = max(8, (block_b // 2 // 8) * 8)
    while block_t > 8 and tile_bytes(block_b, block_t) > vmem_budget_bytes:
        block_t = max(8, (block_t // 2 // 8) * 8)
    return block_b, block_t


def attention_layer(ht, weight, outputs, *, block_b=None, block_t=None,
                    operand_dtype=jnp.float32):
    """ht: (B,1,H), weight: (H,D), outputs: (B,T,D) -> ct: (B,1,D)"""
    B, one, H = ht.shape
    assert one == 1
    Hw, D = weight.shape
    assert Hw == H
    Bo, T, Do = outputs.shape
    assert Bo == B and Do == D

    # Optional bf16 storage for the large/streamed operands (f32 accumulation
    # inside the kernel).  Halves HBM traffic on a memory-bound kernel.
    outputs = outputs.astype(operand_dtype)
    weight = weight.astype(operand_dtype)

    bb_auto, bt_auto = _choose_tiles(B, T, D, jnp.dtype(operand_dtype).itemsize)
    if block_b is None:
        block_b = bb_auto
    if block_t is None:
        block_t = bt_auto

    grid = (pl.cdiv(B, block_b), pl.cdiv(T, block_t))

    # Squeeze the size-1 query dim wrapper-side so kernel refs are clean 2-D /
    # 3-D tiles and the softmax works on a packed (BB, T) layout.
    ht2 = ht.reshape(B, H).astype(jnp.float32)

    kernel = functools.partial(_attention_kernel, t_total=T, block_t=block_t)

    ct2 = pl.pallas_call(
        kernel,
        out_shape=jax.ShapeDtypeStruct((B, D), jnp.float32),
        grid=grid,
        in_specs=[
            pl.BlockSpec((block_b, H), lambda b, t: (b, 0)),
            pl.BlockSpec((H, D), lambda b, t: (0, 0)),
            # TODO(synk): if xprof shows exposed DMA on this stream at large
            # block_b, add pipeline_mode=pl.Buffered(3).
            pl.BlockSpec((block_b, block_t, D), lambda b, t: (b, t, 0)),
        ],
        out_specs=pl.BlockSpec((block_b, D), lambda b, t: (b, 0)),
        scratch_shapes=[
            pltpu.VMEM((block_b, D), jnp.float32),   # q = ht @ W (resident over T)
            pltpu.VMEM((block_b, 1), jnp.float32),   # running max m
            pltpu.VMEM((block_b, 1), jnp.float32),   # running denom l
            pltpu.VMEM((block_b, D), jnp.float32),   # running numerator acc
        ],
        compiler_params=pltpu.CompilerParams(
            dimension_semantics=("parallel", "arbitrary"),
            vmem_limit_bytes=32 << 20,
        ),
    )(ht2, weight, outputs)

    return ct2.reshape(B, 1, D)


def _reference(ht, weight, outputs):
    # Pure-JAX reference mirroring the PyTorch forward exactly.
    B = ht.shape[0]
    Wb = jnp.broadcast_to(weight, (B,) + weight.shape)          # repeat(B,1,1)
    bmm1 = jnp.einsum("bij,bjk->bik", ht, Wb)                   # (B,1,D)
    bmm2 = jnp.einsum("bij,bkj->bik", bmm1, outputs)[:, 0, :]   # (B,T)
    alpha = jax.nn.softmax(bmm2, axis=1)[..., None]             # (B,T,1)
    ct = jnp.sum(alpha * outputs, axis=1, keepdims=True)        # (B,1,D)
    return ct


if __name__ == "__main__":
    # Small shapes consistent with the module: hidden=32, class_emb_dim=32,
    # batch=2, topk/seq steps T=8.
    B, H, D, T = 2, 32, 32, 8

    key = jax.random.PRNGKey(0)
    k_w, k_ht, k_out = jax.random.split(key, 3)

    # nn.Parameter(torch.rand(param_size)) -> deterministic uniform[0,1) init.
    weight = jax.random.uniform(k_w, (H, D), dtype=jnp.float32)
    ht = jax.random.normal(k_ht, (B, 1, H), dtype=jnp.float32)
    outputs = jax.random.normal(k_out, (B, T, D), dtype=jnp.float32)

    ct = attention_layer(ht, weight, outputs)
    ct = jax.block_until_ready(ct)

    ct_ref = _reference(ht, weight, outputs)
    assert ct.shape == (B, 1, D)
    # Exact softmax divide + f32 operands -> tight tolerance vs the reference.
    assert jnp.allclose(ct, ct_ref, atol=1e-5, rtol=1e-5), "mismatch vs reference"

    print("KERNEL_OK")
</pallas_src>

<mosaic_0001>
module attributes {stable_mosaic.version = 11 : i64} {
  func.func @_attention_kernel(%arg0: i32, %arg1: i32, %arg2: memref<2x32xf32, #tpu.memory_space<vmem>>, %arg3: memref<32x32xf32, #tpu.memory_space<vmem>>, %arg4: memref<2x8x32xf32, #tpu.memory_space<vmem>>, %arg5: memref<2x32xf32, #tpu.memory_space<vmem>>, %arg6: memref<2x32xf32, #tpu.memory_space<vmem>>, %arg7: memref<2x1xf32, #tpu.memory_space<vmem>>, %arg8: memref<2x1xf32, #tpu.memory_space<vmem>>, %arg9: memref<2x32xf32, #tpu.memory_space<vmem>>) attributes {dimension_semantics = [#tpu.dimension_semantics<parallel>, #tpu.dimension_semantics<arbitrary>], iteration_bounds = array<i64: 1, 1>, scalar_prefetch = 0 : i64, scratch_operands = 4 : i64, tpu.core_type = #tpu.core_type<tc>, window_params = [{transform_indices = @transform_0, window_bounds = array<i64: 2, 32>}, {pipeline_mode = #tpu.pipeline_mode<synchronous>, transform_indices = @transform_1, window_bounds = array<i64: 32, 32>}, {transform_indices = @transform_2, window_bounds = array<i64: 2, 8, 32>}, {transform_indices = @transform_3, window_bounds = array<i64: 2, 32>}]} {
    %c0_i32 = arith.constant 0 : i32
    %0 = arith.cmpi eq, %arg1, %c0_i32 : i32
    %1 = arith.extui %0 : i1 to i32
    %c0_i32_0 = arith.constant 0 : i32
    %2 = arith.cmpi ne, %1, %c0_i32_0 : i32
    scf.if %2 {
      %c0_22 = arith.constant 0 : index
      %c0_23 = arith.constant 0 : index
      %37 = vector.load %arg2[%c0_22, %c0_23] : memref<2x32xf32, #tpu.memory_space<vmem>>, vector<2x32xf32>
      %c0_24 = arith.constant 0 : index
      %c0_25 = arith.constant 0 : index
      %38 = vector.load %arg3[%c0_24, %c0_25] : memref<32x32xf32, #tpu.memory_space<vmem>>, vector<32x32xf32>
      %cst_26 = arith.constant dense<0.000000e+00> : vector<2x32xf32>
      %39 = tpu.matmul %37, %38, %cst_26 {dimension_numbers = #tpu.dot_dimension_numbers<[1], [0], [0], [1], [0, 0, 1, 1], [], []>} : vector<2x32xf32>, vector<32x32xf32>, vector<2x32xf32> -> vector<2x32xf32>
      %c0_27 = arith.constant 0 : index
      %c0_28 = arith.constant 0 : index
      %40 = vector.load %arg6[%c0_27, %c0_28] : memref<2x32xf32, #tpu.memory_space<vmem>>, vector<2x32xf32>
      tpu.vector_store %arg6[%c0_27, %c0_28], %39 {strides = array<i32>} : memref<2x32xf32, #tpu.memory_space<vmem>>, vector<2x32xf32>,
      %cst_29 = arith.constant 0xFF800000 : f32
      %41 = vector.broadcast %cst_29 : f32 to vector<2x1xf32>
      %c0_30 = arith.constant 0 : index
      %c0_31 = arith.constant 0 : index
      %42 = vector.load %arg7[%c0_30, %c0_31] : memref<2x1xf32, #tpu.memory_space<vmem>>, vector<2x1xf32>
      tpu.vector_store %arg7[%c0_30, %c0_31], %41 {strides = array<i32>} : memref<2x1xf32, #tpu.memory_space<vmem>>, vector<2x1xf32>,
      %cst_32 = arith.constant 0.000000e+00 : f32
      %43 = vector.broadcast %cst_32 : f32 to vector<2x1xf32>
      %c0_33 = arith.constant 0 : index
      %c0_34 = arith.constant 0 : index
      %44 = vector.load %arg8[%c0_33, %c0_34] : memref<2x1xf32, #tpu.memory_space<vmem>>, vector<2x1xf32>
      tpu.vector_store %arg8[%c0_33, %c0_34], %43 {strides = array<i32>} : memref<2x1xf32, #tpu.memory_space<vmem>>, vector<2x1xf32>,
      %cst_35 = arith.constant 0.000000e+00 : f32
      %45 = vector.broadcast %cst_35 : f32 to vector<2x32xf32>
      %c0_36 = arith.constant 0 : index
      %c0_37 = arith.constant 0 : index
      %46 = vector.load %arg9[%c0_36, %c0_37] : memref<2x32xf32, #tpu.memory_space<vmem>>, vector<2x32xf32>
      tpu.vector_store %arg9[%c0_36, %c0_37], %45 {strides = array<i32>} : memref<2x32xf32, #tpu.memory_space<vmem>>, vector<2x32xf32>,
    } else {
    }
    %c0 = arith.constant 0 : index
    %c0_1 = arith.constant 0 : index
    %c0_2 = arith.constant 0 : index
    %3 = vector.load %arg4[%c0, %c0_1, %c0_2] : memref<2x8x32xf32, #tpu.memory_space<vmem>>, vector<2x8x32xf32>
    %c0_3 = arith.constant 0 : index
    %c0_4 = arith.constant 0 : index
    %4 = vector.load %arg6[%c0_3, %c0_4] : memref<2x32xf32, #tpu.memory_space<vmem>>, vector<2x32xf32>
    %5 = vector.shape_cast %4 : vector<2x32xf32> to vector<2x1x32xf32>
    %6 = vector.broadcast %5 : vector<2x1x32xf32> to vector<2x8x32xf32>
    %7 = arith.mulf %6, %3 : vector<2x8x32xf32>
    %cst = arith.constant dense<0.000000e+00> : vector<2x8xf32>
    %8 = vector.multi_reduction <add>, %7, %cst [2] : vector<2x8x32xf32> to vector<2x8xf32>
    %c0_5 = arith.constant 0 : index
    %c0_6 = arith.constant 0 : index
    %9 = vector.load %arg7[%c0_5, %c0_6] : memref<2x1xf32, #tpu.memory_space<vmem>>, vector<2x1xf32>
    %cst_7 = arith.constant dense<0xFF800000> : vector<2xf32>
    %10 = vector.multi_reduction <maximumf>, %8, %cst_7 [1] : vector<2x8xf32> to vector<2xf32>
    %11 = vector.shape_cast %10 : vector<2xf32> to vector<2x1xf32>
    %12 = arith.maximumf %9, %11 : vector<2x1xf32>
    %13 = arith.subf %9, %12 : vector<2x1xf32>
    %14 = math.exp %13 : vector<2x1xf32>
    %15 = vector.broadcast %12 : vector<2x1xf32> to vector<2x8xf32>
    %16 = arith.subf %8, %15 : vector<2x8xf32>
    %17 = math.exp %16 : vector<2x8xf32>
    %c0_8 = arith.constant 0 : index
    %c0_9 = arith.constant 0 : index
    %18 = vector.load %arg8[%c0_8, %c0_9] : memref<2x1xf32, #tpu.memory_space<vmem>>, vector<2x1xf32>
    %19 = arith.mulf %14, %18 : vector<2x1xf32>
    %cst_10 = arith.constant dense<0.000000e+00> : vector<2xf32>
    %20 = vector.multi_reduction <add>, %17, %cst_10 [1] : vector<2x8xf32> to vector<2xf32>
    %21 = vector.shape_cast %20 : vector<2xf32> to vector<2x1xf32>
    %22 = arith.addf %19, %21 : vector<2x1xf32>
    %c0_11 = arith.constant 0 : index
    %c0_12 = arith.constant 0 : index
    %23 = vector.load %arg8[%c0_11, %c0_12] : memref<2x1xf32, #tpu.memory_space<vmem>>, vector<2x1xf32>
    tpu.vector_store %arg8[%c0_11, %c0_12], %22 {strides = array<i32>} : memref<2x1xf32, #tpu.memory_space<vmem>>, vector<2x1xf32>,
    %c0_13 = arith.constant 0 : index
    %c0_14 = arith.constant 0 : index
    %24 = vector.load %arg9[%c0_13, %c0_14] : memref<2x32xf32, #tpu.memory_space<vmem>>, vector<2x32xf32>
    %25 = vector.broadcast %14 : vector<2x1xf32> to vector<2x32xf32>
    %26 = arith.mulf %25, %24 : vector<2x32xf32>
    %27 = vector.shape_cast %17 : vector<2x8xf32> to vector<2x8x1xf32>
    %28 = vector.broadcast %27 : vector<2x8x1xf32> to vector<2x8x32xf32>
    %29 = arith.mulf %28, %3 : vector<2x8x32xf32>
    %cst_15 = arith.constant dense<0.000000e+00> : vector<2x32xf32>
    %30 = vector.multi_reduction <add>, %29, %cst_15 [1] : vector<2x8x32xf32> to vector<2x32xf32>
    %31 = arith.addf %26, %30 : vector<2x32xf32>
    %c0_16 = arith.constant 0 : index
    %c0_17 = arith.constant 0 : index
    %32 = vector.load %arg9[%c0_16, %c0_17] : memref<2x32xf32, #tpu.memory_space<vmem>>, vector<2x32xf32>
    tpu.vector_store %arg9[%c0_16, %c0_17], %31 {strides = array<i32>} : memref<2x32xf32, #tpu.memory_space<vmem>>, vector<2x32xf32>,
    %c0_18 = arith.constant 0 : index
    %c0_19 = arith.constant 0 : index
    %33 = vector.load %arg7[%c0_18, %c0_19] : memref<2x1xf32, #tpu.memory_space<vmem>>, vector<2x1xf32>
    tpu.vector_store %arg7[%c0_18, %c0_19], %12 {strides = array<i32>} : memref<2x1xf32, #tpu.memory_space<vmem>>, vector<2x1xf32>,
    %c0_i32_20 = arith.constant 0 : i32
    %34 = arith.cmpi eq, %arg1, %c0_i32_20 : i32
    %35 = arith.extui %34 : i1 to i32
    %c0_i32_21 = arith.constant 0 : i32
    %36 = arith.cmpi ne, %35, %c0_i32_21 : i32
    scf.if %36 {
      %c0_22 = arith.constant 0 : index
      %c0_23 = arith.constant 0 : index
      %37 = vector.load %arg9[%c0_22, %c0_23] : memref<2x32xf32, #tpu.memory_space<vmem>>, vector<2x32xf32>
      %c0_24 = arith.constant 0 : index
      %c0_25 = arith.constant 0 : index
      %38 = vector.load %arg8[%c0_24, %c0_25] : memref<2x1xf32, #tpu.memory_space<vmem>>, vector<2x1xf32>
      %39 = vector.broadcast %38 : vector<2x1xf32> to vector<2x32xf32>
      %40 = arith.divf %37, %39 : vector<2x32xf32>
      %c0_26 = arith.constant 0 : index
      %c0_27 = arith.constant 0 : index
      %41 = vector.load %arg5[%c0_26, %c0_27] : memref<2x32xf32, #tpu.memory_space<vmem>>, vector<2x32xf32>
      tpu.vector_store %arg5[%c0_26, %c0_27], %40 {strides = array<i32>} : memref<2x32xf32, #tpu.memory_space<vmem>>, vector<2x32xf32>,
    } else {
    }
    return
  }
  func.func @transform_0(%arg0: i32, %arg1: i32) -> (i32, i32) {
    %c0_i32 = arith.constant 0 : i32
    %c0_i32_0 = arith.constant 0 : i32
    return %arg0, %c0_i32 : i32, i32
  }
  func.func @transform_1(%arg0: i32, %arg1: i32) -> (i32, i32) {
    %c0_i32 = arith.constant 0 : i32
    %c0_i32_0 = arith.constant 0 : i32
    %c0_i32_1 = arith.constant 0 : i32
    return %c0_i32, %c0_i32_0 : i32, i32
  }
  func.func @transform_2(%arg0: i32, %arg1: i32) -> (i32, i32, i32) {
    %c0_i32 = arith.constant 0 : i32
    %c0_i32_0 = arith.constant 0 : i32
    return %arg0, %arg1, %c0_i32 : i32, i32, i32
  }
  func.func @transform_3(%arg0: i32, %arg1: i32) -> (i32, i32) {
    %c0_i32 = arith.constant 0 : i32
    %c0_i32_0 = arith.constant 0 : i32
    return %arg0, %c0_i32 : i32, i32
  }
}

</mosaic_0001>

<llo_original>
// kernel: tpu_custom_call.1
$region0: #{tpu_custom_call.1}
  #allocation0 [shape = 'u32[]', space=smem, size = 0x4, offset = 0x4, fixed_abs, tag = 'smem constant byte address 0x4 - core index']
  #allocation1 [shape = 'u32[144,128]{1,0:T(1,128)}', space=vmem, size = 0x12000, scoped, tag = 'internal scratch']
  #allocation2 [shape = 'f32[2,32]{1,0:T(2,128)}', space=vmem, size = 0x400, scoped, tag = 'scratch operand']
  #allocation3 [shape = 'f32[2,1]{1,0:T(2,128)}', space=vmem, size = 0x400, scoped, tag = 'scratch operand']
  #allocation4 [shape = 'f32[2,1]{1,0:T(2,128)}', space=vmem, size = 0x400, scoped, tag = 'scratch operand']
  #allocation5 [shape = 'f32[2,32]{1,0:T(2,128)}', space=vmem, size = 0x400, scoped, tag = 'scratch operand']
  %s0 = inlined_call_operand.hbm [shape: f32[2,32], index: 0, kind: input, shape index: {}]
  %s1 = inlined_call_operand.hbm [shape: f32[32,32], index: 1, kind: input, shape index: {}]
  %s2 = inlined_call_operand.hbm [shape: f32[2,8,32], index: 2, kind: input, shape index: {}]
  %s3 = inlined_call_operand.hbm [shape: f32[2,32], index: 3, kind: output, shape index: {}]
  %s4 = sld [smem:[#allocation0]]
  $region42: #{tpu_custom_call.1} parent=0
    _
  %s6 = ssub.s32 1, %s4
  %s7 = scalar_select 0, %s6, %s4
  $region1: #{tpu_custom_call.1} parent=0
    #allocation6 [shape = 'u8[1024]{0}', space=vmem, size = 0x400, scoped, tag = 'input window, operand 0, single buffered']
    #allocation7 [shape = 's32[1]{0}', space=sflag, size = 0x4, scoped, tag = 'scoped memory for tpu_custom_call.1']
    #allocation8 [shape = 's32[1]{0}', space=sflag, size = 0x4, scoped, tag = 'scoped memory for tpu_custom_call.1']
    #allocation9 [shape = 'u8[16384]{0}', space=vmem, size = 0x4000, scoped, tag = 'input window, operand 1, single buffered']
    #allocation10 [shape = 's32[1]{0}', space=sflag, size = 0x4, scoped, tag = 'scoped memory for tpu_custom_call.1']
    #allocation11 [shape = 'u8[8192]{0}', space=vmem, size = 0x2000, scoped, tag = 'input window, operand 2, single buffered']
    #allocation12 [shape = 'u8[1024]{0}', space=vmem, size = 0x400, scoped, tag = 'output window, operand 0, single buffered']
    %8 = vsyncpa [#allocation7], 0
    %9 = vsyncpa [#allocation10], 0
    %10 = vsyncpa [#allocation8], 0
    // Predicated region
    $region2: #{tpu_custom_call.1} parent=1 // pred_check
      _
    $region3: #{tpu_custom_call.1} parent=1 // pred_check_branch
      %12 = sbr.rel (0) target = $region5
    $region4: #{tpu_custom_call.1} parent=1 // pred_region
      %s14 = ssub.s32 32, 32
      %15 = vsyncadd [#allocation7], %s14
      %s17 = sshll.u32 [#allocation6], 4
      %s18 = int_to_ptr.vmem [resolvable:$true] %s17
      %20 = dma.hbm_to_vmem [thread:$0]  %s0, 32, %s18, [#allocation7]
    $region5: #{tpu_custom_call.1} parent=1 // pred_fallthru
      _
    // Predicated region
    $region6: #{tpu_custom_call.1} parent=1 // pred_check
      _
    $region7: #{tpu_custom_call.1} parent=1 // pred_check_branch
      %22 = sbr.rel (0) target = $region9
    $region8: #{tpu_custom_call.1} parent=1 // pred_region
      %s24 = ssub.s32 512, 512
      %25 = vsyncadd [#allocation10], %s24
      %s26 = sshll.u32 [#allocation9], 4
      %s27 = int_to_ptr.vmem [resolvable:$true] %s26
      %32 = dma.hbm_to_vmem [thread:$0]  %s1, 512, %s27, [#allocation10], 128, 128, 8
    $region9: #{tpu_custom_call.1} parent=1 // pred_fallthru
      _
    // Predicated region
    $region10: #{tpu_custom_call.1} parent=1 // pred_check
      _
    $region11: #{tpu_custom_call.1} parent=1 // pred_check_branch
      %34 = sbr.rel (0) target = $region13
    $region12: #{tpu_custom_call.1} parent=1 // pred_region
      %s36 = ssub.s32 256, 256
      %37 = vsyncadd [#allocation10], %s36
      %s38 = sshll.u32 [#allocation11], 4
      %s39 = int_to_ptr.vmem [resolvable:$true] %s38
      %44 = dma.hbm_to_vmem [thread:$0]  %s2, 256, %s39, [#allocation10], 128, 128, 8
    $region13: #{tpu_custom_call.1} parent=1 // pred_fallthru
      _
    // Predicated region
    $region14: #{tpu_custom_call.1} parent=1 // pred_check
      _
    $region15: #{tpu_custom_call.1} parent=1 // pred_check_branch
      %46 = sbr.rel (0) target = $region17
    $region16: #{tpu_custom_call.1} parent=1 // pred_region
      %47 = dma.done [#allocation7], 32
    $region17: #{tpu_custom_call.1} parent=1 // pred_fallthru
      _
    // Predicated region
    $region18: #{tpu_custom_call.1} parent=1 // pred_check
      _
    $region19: #{tpu_custom_call.1} parent=1 // pred_check_branch
      %49 = sbr.rel (0) target = $region21
    $region20: #{tpu_custom_call.1} parent=1 // pred_region
      %50 = dma.done [#allocation10], 512
    $region21: #{tpu_custom_call.1} parent=1 // pred_fallthru
      _
    // Predicated region
    $region22: #{tpu_custom_call.1} parent=1 // pred_check
      _
    $region23: #{tpu_custom_call.1} parent=1 // pred_check_branch
      %52 = sbr.rel (0) target = $region25
    $region24: #{tpu_custom_call.1} parent=1 // pred_region
      %53 = dma.done [#allocation10], 256
    $region25: #{tpu_custom_call.1} parent=1 // pred_fallthru
      _
    %p54 = scmp.eq.s32.totalorder 0, 0
    // Predicated region
    $region26: #{tpu_custom_call.1} parent=1 // pred_check
      %p55 = pneg %p54
    $region27: #{tpu_custom_call.1} parent=1 // pred_check_branch
      %57 = sbr.rel (%p55) target = $region29
    $region28: #{tpu_custom_call.1} parent=1 // pred_region
      %v58 = vld [vmem:[#allocation6] sm:$0x3]
      %v59 = vld [vmem:[#allocation9] sm:$0xff]
      %v60 = vld [vmem:[#allocation9 + $0x8] sm:$0xff]
      %v61 = vld [vmem:[#allocation9 + $0x10] sm:$0xff]
      %v62 = vld [vmem:[#allocation9 + $0x18] sm:$0xff]
      %vm63 = vcmask 261120
      %v65 = vsel %vm63, %v58, 0
      %67 = vmatprep.subr.mxu0 0.0
      %68 = vmatpush1.msra.mxu0 %v59
      %69 = vmatprep.subr.mxu0 0.0
      %70 = vmatpush1.msra.mxu0 %v60
      %71 = vmatprep.subr.mxu0 0.0
      %72 = vmatpush1.msra.mxu0 %v61
      %73 = vmatprep.subr.mxu0 0.0
      %74 = vmatpush1.msra.mxu0 %v62
      %75 = vmatprep.subr.mxu0 0.0
      %76 = vmatpush1.msra.mxu0 0.0
      %77 = vmatprep.subr.mxu0 0.0
      %78 = vmatpush1.msra.mxu0 0.0
      %79 = vmatprep.subr.mxu0 0.0
      %80 = vmatpush1.msra.mxu0 0.0
      %81 = vmatprep.subr.mxu0 0.0
      %82 = vmatpush1.msra.mxu0 0.0
      %83 = vmatprep.subr.mxu0 0.0
      %84 = vmatpush1.msra.mxu0 0.0
      %85 = vmatprep.subr.mxu0 0.0
      %86 = vmatpush1.msra.mxu0 0.0
      %87 = vmatprep.subr.mxu0 0.0
      %88 = vmatpush1.msra.mxu0 0.0
      %89 = vmatprep.subr.mxu0 0.0
      %90 = vmatpush1.msra.mxu0 0.0
      %91 = vmatprep.subr.mxu0 0.0
      %92 = vmatpush1.msra.mxu0 0.0
      %93 = vmatprep.subr.mxu0 0.0
      %94 = vmatpush1.msra.mxu0 0.0
      %95 = vmatprep.subr.mxu0 0.0
      %96 = vmatpush1.msra.mxu0 0.0
      %97 = vmatprep.subr.mxu0 0.0
      %98 = vmatpush1.msra.mxu0 0.0
      %99 = vmatprep.subr.mxu0 0.0
      %100 = vmatpush1.msra.mxu0 0.0
      %101 = vmatprep.subr.mxu0 0.0
      %102 = vmatpush1.msra.mxu0 0.0
      %103 = vmatprep.subr.mxu0 0.0
      %104 = vmatpush1.msra.mxu0 0.0
      %105 = vmatprep.subr.mxu0 0.0
      %106 = vmatpush1.msra.mxu0 0.0
      %107 = vmatprep.subr.mxu0 0.0
      %108 = vmatpush1.msra.mxu0 0.0
      %109 = vmatprep.subr.mxu0 0.0
      %110 = vmatpush1.msra.mxu0 0.0
      %111 = vmatprep.subr.mxu0 0.0
      %112 = vmatpush1.msra.mxu0 0.0
      %113 = vmatprep.subr.mxu0 0.0
      %114 = vmatpush1.msra.mxu0 0.0
      %115 = vmatprep.subr.mxu0 0.0
      %116 = vmatpush1.msra.mxu0 0.0
      %117 = vmatprep.subr.mxu0 0.0
      %118 = vmatpush1.msra.mxu0 0.0
      %119 = vmatprep.subr.mxu0 0.0
      %120 = vmatpush1.msra.mxu0 0.0
      %121 = vmatprep.subr.mxu0 0.0
      %122 = vmatpush1.msra.mxu0 0.0
      %123 = vmatprep.subr.mxu0 0.0
      %124 = vmatpush1.msra.mxu0 0.0
      %125 = vmatprep.subr.mxu0 0.0
      %126 = vmatpush1.msra.mxu0 0.0
      %127 = vmatprep.subr.mxu0 0.0
      %128 = vmatpush1.msra.mxu0 0.0
      %129 = vmatprep.subr.mxu0 0.0
      %130 = vmatpush1.msra.mxu0 0.0
      %131 = vmatprep.mubr.f32.mxu0 0.0
      %132 = vmatmul.mubr.f32.gmra.mrb[0].mxu0 %v65
      %v133 = vpop.f32.mrb[0].mxu0
      %v134 = vadd.f32 0.0, %v133
      %v135 = vpop.f32.mrb[0].mxu0
      %136 = vdwg.mxu0
      %vm137 = vcmask 254976
      %138 = vst.msk [vmem:[#allocation2] sm:$0x3] %vm137, %v134
      %vm139 = vcmask 1024
      %140 = vst.msk [vmem:[#allocation3] sm:$0x3] %vm139, -inf
      %141 = vst.msk [vmem:[#allocation4] sm:$0x3] %vm139, 0.0
      %142 = vst.msk [vmem:[#allocation5] sm:$0x3] %vm137, 0.0
    $region29: #{tpu_custom_call.1} parent=1 // pred_fallthru
      _
    %v143 = vld [vmem:[#allocation11] sm:$0xff]
    %v144 = vld [vmem:[#allocation11 + $0x8] sm:$0xff]
    %v145 = vld [vmem:[#allocation2] sm:$0x3]
    %v148 = vunpack.c.l.s4 1966171168
    %v149 = vunpack.c.0.s8 %v148
    %v150 = vlaneseq
    %v151 = vshrl.u32 %v150, 7
    %v152 = vsub.s32 %v149, %v151
    %v153 = vrot.slane %v145, %v152
    %v154 = vcombine.high %v153, %v153
    %v156 = vunpack.c.l.s4 1966171168
    %v157 = vunpack.c.0.s8 %v156
    %v158 = vlaneseq
    %v159 = vshrl.u32 %v158, 7
    %v160 = vsub.s32 %v157, %v159
    %v161 = vrot.slane %v153, %v160
    %v163 = vunpack.c.l.s4 1966171168
    %v164 = vunpack.c.0.s8 %v163
    %v165 = vlaneseq
    %v166 = vshrl.u32 %v165, 7
    %v167 = vsub.s32 %v164, %v166
    %v168 = vrot.slane %v154, %v167
    %v169 = vlaneseq
    %v170 = vshrl.u32 %v169, 7
    %v171 = vsub.s32 0, %v170
    %v172 = vrot.slane %v161, %v171
    %v173 = vlaneseq
    %v174 = vshrl.u32 %v173, 7
    %v175 = vsub.s32 0, %v174
    %v176 = vrot.slane %v168, %v175
    %v179 = vmul.f32 %v172, %v143
    %v180 = vmul.f32 %v176, %v144
    %vm181 = vcmask 261120
    %v182 = vsel %vm181, %v179, 0.0
    %183 = vadd.xlane.f32.xlu0 %v182
    %v184 = vpop.xlane.xlu0 %183
    %v185 = vsel %vm181, %v180, 0.0
    %186 = vadd.xlane.f32.xlu0 %v185
    %v187 = vpop.xlane.xlu0 %186
    %v188 = vld [vmem:[#allocation3] sm:$0x3]
    %v191 = vlaneseq
    %v192 = vand.u32 %v191, 127
    %v193 = vlaneseq
    %v194 = vshrl.u32 %v193, 7
    %v195 = vsub.s32 %v192, %v194
    %v196 = vrot.slane %v184, %v195
    %v197 = vlaneseq
    %v198 = vshrl.u32 %v197, 7
    %v199 = vsub.s32 %v192, %v198
    %v200 = vrot.slane %v187, %v199
    %vm201 = vcmask 1041409
    %v202 = vsel %vm201, %v200, %v196
    %vm204 = vcmask 58368
    %v205 = vsel %vm204, %v202, -inf
    %206 = vmax.xlane.f32.xlu0 %v205
    %v207 = vpop.xlane.xlu0 %206
    %v208 = vmax.f32 %v188, %v207
    %v209 = vsub.f32 %v188, %v208
    %v210 = vmul.f32 %v209, 1.442695
    %v211 = vpow.pop %v210
    %213 = vset.pattern.permute.xlu0 0
    %214 = vperm.xlu0 %213, %v208
    %v215 = vpop.permute.xlu0 %214
    %v216 = vlaneseq
    %v217 = vshrl.u32 %v216, 7
    %v218 = vsub.s32 0, %v217
    %v219 = vrot.slane %v215, %v218
    %v220 = vlaneseq
    %v221 = vshrl.u32 %v220, 7
    %v222 = vsub.s32 1, %v221
    %v223 = vrot.slane %v215, %v222
    %v226 = vsub.f32 %v184, %v219
    %v227 = vsub.f32 %v187, %v223
    %v228 = vmul.f32 %v226, 1.442695
    %v229 = vpow.pop %v228
    %v230 = vmul.f32 %v227, 1.442695
    %v231 = vpow.pop %v230
    %v232 = vld [vmem:[#allocation4] sm:$0x3]
    %v233 = vmul.f32 %v211, %v232
    %236 = vset.pattern.permute.xlu0 0
    %237 = vperm.xlu0 %236, %v229
    %v238 = vpop.permute.xlu0 %237
    %239 = vset.pattern.permute.xlu0 0
    %240 = vperm.xlu0 %239, %v231
    %v241 = vpop.permute.xlu0 %240
    %v242 = vlaneseq
    %v243 = vshrl.u32 %v242, 7
    %v244 = vsub.s32 %v192, %v243
    %v245 = vrot.slane %v238, %v244
    %v246 = vlaneseq
    %v247 = vshrl.u32 %v246, 7
    %v248 = vsub.s32 %v192, %v247
    %v249 = vrot.slane %v241, %v248
    %v250 = vsel %vm201, %v249, %v245
    %v252 = vsel %vm204, %v250, 0.0
    %253 = vadd.xlane.f32.xlu0 %v252
    %v254 = vpop.xlane.xlu0 %253
    %v255 = vadd.f32 %v233, %v254
    %vm256 = vcmask 1024
    %257 = vst.msk [vmem:[#allocation4] sm:$0x3] %vm256, %v255
    %v258 = vld [vmem:[#allocation5] sm:$0x3]
    %260 = vset.pattern.permute.xlu0 0
    %261 = vperm.xlu0 %260, %v211
    %v262 = vpop.permute.xlu0 %261
    %v264 = vmul.f32 %v262, %v258
    %v267 = vmul.f32 %v238, %v143
    %v268 = vmul.f32 %v241, %v144
    %v269 = vsel %vm181, %v267, 0.0
    %v270 = vrot.slane %v269, 4
    %v271 = vadd.f32 %v269, %v270
    %v272 = vrot.slane %v271, 2
    %v273 = vadd.f32 %v271, %v272
    %v274 = vrot.slane %v273, 1
    %v275 = vadd.f32 %v273, %v274
    %v276 = vsel %vm181, %v268, 0.0
    %v277 = vrot.slane %v276, 4
    %v278 = vadd.f32 %v276, %v277
    %v279 = vrot.slane %v278, 2
    %v280 = vadd.f32 %v278, %v279
    %v281 = vrot.slane %v280, 1
    %v282 = vadd.f32 %v280, %v281
    %v285 = vsel %vm201, %v282, %v275
    %v287 = vadd.f32 %v264, %v285
    %vm288 = vcmask 254976
    %289 = vst.msk [vmem:[#allocation5] sm:$0x3] %vm288, %v287
    %290 = vst.msk [vmem:[#allocation3] sm:$0x3] %vm256, %v208
    // Predicated region
    $region30: #{tpu_custom_call.1} parent=1 // pred_check
      %p291 = pneg %p54
    $region31: #{tpu_custom_call.1} parent=1 // pred_check_branch
      %293 = sbr.rel (%p291) target = $region33
    $region32: #{tpu_custom_call.1} parent=1 // pred_region
      %v294 = vld [vmem:[#allocation5] sm:$0x3]
      %v295 = vld [vmem:[#allocation4] sm:$0x3]
      %297 = vset.pattern.permute.xlu0 0
      %298 = vperm.xlu0 %297, %v295
      %v299 = vpop.permute.xlu0 %298
      %v301 = vrcp.pop %v299
      %v302 = vmul.f32 %v294, %v301
      %303 = vst.msk [vmem:[#allocation12] sm:$0x3] %vm288, %v302
    $region33: #{tpu_custom_call.1} parent=1 // pred_fallthru
      _
    // Predicated region
    $region34: #{tpu_custom_call.1} parent=1 // pred_check
      _
    $region35: #{tpu_custom_call.1} parent=1 // pred_check_branch
      %305 = sbr.rel (0) target = $region37
    $region36: #{tpu_custom_call.1} parent=1 // pred_region
      %s307 = ssub.s32 32, 32
      %308 = vsyncadd [#allocation8], %s307
      %s310 = sshll.u32 [#allocation12], 4
      %s311 = int_to_ptr.vmem [resolvable:$true] %s310
      %313 = dma.vmem_to_hbm [thread:$0]  %s311, 32, %s3, [#allocation8]
    $region37: #{tpu_custom_call.1} parent=1 // pred_fallthru
      _
    // Predicated region
    $region38: #{tpu_custom_call.1} parent=1 // pred_check
      _
    $region39: #{tpu_custom_call.1} parent=1 // pred_check_branch
      %315 = sbr.rel (0) target = $region41
    $region40: #{tpu_custom_call.1} parent=1 // pred_region
      %316 = dma.done [#allocation8], 32
    $region41: #{tpu_custom_call.1} parent=1 // pred_fallthru
      _
    %317 = vsyncpa [#allocation7], 1
    %318 = vsyncpa [#allocation10], 1
    %319 = vsyncpa [#allocation8], 1

</llo_original>
